<compile_context>
chip_gen: v7x
topology: tpu7x:2x2x1
jax: 0.10.0
libtpu: 0.0.40
codegen_flags: <defaults>
</compile_context>

<pallas_src>
import math

import jax
import jax.numpy as jnp
from jax.experimental import pallas as pl
from jax.experimental.pallas import tpu as pltpu

_LANES = 128  # lane width of a vreg; cells map onto the lane axis


# ----------------------------------------------------------------------------
# Parameter initialization (mirrors SphericalModelNode.__init__/init_gate_params)
# ----------------------------------------------------------------------------
def _log_odds_ratio(p: float) -> float:
    """Replicates ModelNode.__log_odds_ratio__ (log(p/(1-p)) with clipping)."""
    if p < 1e-10:
        return -10.0
    if p > 1.0 - 1e-10:
        return 10.0
    return math.log(p / (1.0 - p))


def init_spherical_params(init_tree):
    """init_tree is [[dim_name, low, upp], ...] x 3, like the PyTorch module."""
    x_dist = init_tree[0][2] - init_tree[0][1]
    y_dist = init_tree[1][2] - init_tree[1][1]
    z_dist = init_tree[2][2] - init_tree[2][1]
    center = [
        init_tree[0][1] + x_dist / 2.0,
        init_tree[1][1] + y_dist / 2.0,
        init_tree[2][1] + z_dist / 2.0,
    ]
    radius = (x_dist / 2.0 + y_dist / 2.0 + z_dist / 2.0) / 3.0
    return {
        "center1_param": jnp.float32(_log_odds_ratio(center[0])),
        "center2_param": jnp.float32(_log_odds_ratio(center[1])),
        "center3_param": jnp.float32(_log_odds_ratio(center[2])),
        "radius_param": jnp.float32(_log_odds_ratio(radius)),
    }


# ----------------------------------------------------------------------------
# Pallas kernel: per-cell distance-to-sphere-center + logsigmoid
# ----------------------------------------------------------------------------
def _sphere_logp_kernel(params_ref, x_ref, o_ref):
    # params_ref: SMEM (4,)          -> [c1, c2, c3, -logistic_k]
    # x_ref:      VMEM (3, BR, 128)  feature-major, lane-dense cell tiles
    # o_ref:      VMEM (BR, 128)
    c1 = params_ref[0]
    c2 = params_ref[1]
    c3 = params_ref[2]
    neg_k = params_ref[3]

    d1 = x_ref[0] - c1  # (BR, 128)
    d2 = x_ref[1] - c2
    d3 = x_ref[2] - c3
    dist = jnp.sqrt(d1 * d1 + d2 * d2 + d3 * d3)
    z = neg_k * dist
    # logsigmoid(z), numerically stable for either sign of z.
    o_ref[...] = jnp.minimum(z, 0.0) - jnp.log1p(jnp.exp(-jnp.abs(z)))


def _spherical_logp_feature_major(x3, c1, c2, c3, logistic_k, *, block_rows=1024):
    """logp for feature-major input x3 of shape (3, n_cell), float32.

    Use this entry point directly when the producer can emit x feature-major;
    it avoids the extra HBM transpose pass of the row-major wrapper.
    """
    n_cell = x3.shape[1]

    # Round cells up to whole (row=8*sublane, lane=128) tiles, then to a whole
    # number of blocks so the grid divides evenly.
    rows = pl.cdiv(n_cell, _LANES)
    rows8 = pl.cdiv(rows, 8) * 8
    br = max(8, 8 * (min(int(block_rows), rows8) // 8))   # block rows, mult of 8
    rows_pad = pl.cdiv(rows8, br) * br
    n_pad = rows_pad * _LANES

    if n_pad != n_cell:
        x3 = jnp.pad(x3, ((0, 0), (0, n_pad - n_cell)))   # padded cells: zeros
    x3r = x3.reshape(3, rows_pad, _LANES)

    neg_k = -jnp.asarray(logistic_k, dtype=jnp.float32)
    scalar_params = jnp.stack(
        [jnp.asarray(c1, jnp.float32),
         jnp.asarray(c2, jnp.float32),
         jnp.asarray(c3, jnp.float32),
         neg_k]
    )

    grid = (rows_pad // br,)
    logp_2d = pl.pallas_call(
        _sphere_logp_kernel,
        out_shape=jax.ShapeDtypeStruct((rows_pad, _LANES), jnp.float32),
        grid_spec=pltpu.PrefetchScalarGridSpec(
            num_scalar_prefetch=0,
            grid=grid,
            in_specs=[
                pl.BlockSpec(memory_space=pltpu.SMEM),              # params (4,)
                pl.BlockSpec((3, br, _LANES), lambda i: (0, i, 0)),  # x tile
            ],
            out_specs=pl.BlockSpec((br, _LANES), lambda i: (i, 0)),
        ),
        compiler_params=pltpu.CompilerParams(
            dimension_semantics=("parallel",),
        ),
    )(scalar_params, x3r)

    return logp_2d.reshape(n_pad)[:n_cell]


def spherical_model_node_forward(x, params, logistic_k, *, block_rows=1024):
    """
    x: (n_cell, n_cell_features) with n_cell_features >= 3 (row-major, like the
       PyTorch module).
    Returns (logp, ref_reg, init_reg, size_reg, corner_reg); the four
    regularizers are identically 0 for the spherical node.
    """
    assert x.shape[1] >= 3, "SphericalModelNode uses features 0,1,2"

    # Glue: sigmoid of the gate parameters (tiny scalar work, outside kernel).
    c1 = jax.nn.sigmoid(params["center1_param"])
    c2 = jax.nn.sigmoid(params["center2_param"])
    c3 = jax.nn.sigmoid(params["center3_param"])
    # radius = sigmoid(radius_param) is computed by the torch forward but is
    # unused by compute_logp, so it does not affect the output.

    # TODO(synk): the slice+transpose below is one extra HBM pass; producers
    # that can emit x feature-major should call _spherical_logp_feature_major
    # directly (and tiny n_cell is better served by plain fused XLA or by
    # batching many nodes into one call).
    x3 = jnp.transpose(x[:, :3].astype(jnp.float32))  # (3, n_cell)

    logp = _spherical_logp_feature_major(
        x3, c1, c2, c3, logistic_k, block_rows=block_rows
    )
    return logp, 0.0, 0.0, 0.0, 0.0


# ----------------------------------------------------------------------------
# Reference (pure JAX) for sanity check
# ----------------------------------------------------------------------------
def _reference_forward(x, params, logistic_k):
    c1 = jax.nn.sigmoid(params["center1_param"])
    c2 = jax.nn.sigmoid(params["center2_param"])
    c3 = jax.nn.sigmoid(params["center3_param"])
    dist = jnp.sqrt(
        (x[:, 0] - c1) ** 2 + (x[:, 1] - c2) ** 2 + (x[:, 2] - c3) ** 2
    )
    return jax.nn.log_sigmoid(-logistic_k * dist)


if __name__ == "__main__":
    key = jax.random.PRNGKey(0)

    # Deterministic synthetic "init_tree": [[dim, low, upp], ...] x 3
    init_tree = [["D1", 0.2, 0.6], ["D2", 0.3, 0.7], ["D3", 0.1, 0.5]]
    logistic_k = 10.0
    params = init_spherical_params(init_tree)

    # Small shapes; n_cell deliberately NOT a multiple of 128 to exercise the
    # padding path.
    n_cell, n_feat = 300, 5
    x = jax.random.uniform(key, (n_cell, n_feat), dtype=jnp.float32)

    logp, r1, r2, r3, r4 = spherical_model_node_forward(x, params, logistic_k)
    logp = jax.block_until_ready(logp)

    ref = _reference_forward(x, params, logistic_k)
    assert logp.shape == (n_cell,)
    assert jnp.allclose(logp, ref, atol=1e-5, rtol=1e-5), (
        f"max err {jnp.max(jnp.abs(logp - ref))}"
    )
    assert (r1, r2, r3, r4) == (0.0, 0.0, 0.0, 0.0)

    # Negative logistic_k exercises the sign-safe logsigmoid path.
    logp_neg, *_ = spherical_model_node_forward(x, params, -3.0)
    logp_neg = jax.block_until_ready(logp_neg)
    ref_neg = _reference_forward(x, params, -3.0)
    assert jnp.all(jnp.isfinite(logp_neg))
    assert jnp.allclose(logp_neg, ref_neg, atol=1e-5, rtol=1e-5), (
        f"max err {jnp.max(jnp.abs(logp_neg - ref_neg))}"
    )

    print("KERNEL_OK")
</pallas_src>

<mosaic_0001>
module attributes {stable_mosaic.version = 11 : i64} {
  func.func @_sphere_logp_kernel(%arg0: i32, %arg1: memref<4xf32, #tpu.memory_space<smem>>, %arg2: memref<3x8x128xf32, #tpu.memory_space<vmem>>, %arg3: memref<8x128xf32, #tpu.memory_space<vmem>>) attributes {dimension_semantics = [#tpu.dimension_semantics<parallel>], iteration_bounds = array<i64: 1>, scalar_prefetch = 0 : i64, scratch_operands = 0 : i64, tpu.core_type = #tpu.core_type<tc>, window_params = [{transform_indices = @transform_0, window_bounds = array<i64: 4>}, {transform_indices = @transform_1, window_bounds = array<i64: 3, 8, 128>}, {transform_indices = @transform_2, window_bounds = array<i64: 8, 128>}]} {
    %c0 = arith.constant 0 : index
    %0 = memref.load %arg1[%c0] : memref<4xf32, #tpu.memory_space<smem>>
    %c1 = arith.constant 1 : index
    %1 = memref.load %arg1[%c1] : memref<4xf32, #tpu.memory_space<smem>>
    %c2 = arith.constant 2 : index
    %2 = memref.load %arg1[%c2] : memref<4xf32, #tpu.memory_space<smem>>
    %c3 = arith.constant 3 : index
    %3 = memref.load %arg1[%c3] : memref<4xf32, #tpu.memory_space<smem>>
    %c0_0 = arith.constant 0 : index
    %c0_1 = arith.constant 0 : index
    %c0_2 = arith.constant 0 : index
    %4 = vector.load %arg2[%c0_0, %c0_1, %c0_2] : memref<3x8x128xf32, #tpu.memory_space<vmem>>, vector<1x8x128xf32>
    %5 = vector.shape_cast %4 : vector<1x8x128xf32> to vector<8x128xf32>
    %6 = vector.broadcast %0 : f32 to vector<8x128xf32>
    %7 = arith.subf %5, %6 : vector<8x128xf32>
    %c1_3 = arith.constant 1 : index
    %c0_4 = arith.constant 0 : index
    %c0_5 = arith.constant 0 : index
    %8 = vector.load %arg2[%c1_3, %c0_4, %c0_5] : memref<3x8x128xf32, #tpu.memory_space<vmem>>, vector<1x8x128xf32>
    %9 = vector.shape_cast %8 : vector<1x8x128xf32> to vector<8x128xf32>
    %10 = vector.broadcast %1 : f32 to vector<8x128xf32>
    %11 = arith.subf %9, %10 : vector<8x128xf32>
    %c2_6 = arith.constant 2 : index
    %c0_7 = arith.constant 0 : index
    %c0_8 = arith.constant 0 : index
    %12 = vector.load %arg2[%c2_6, %c0_7, %c0_8] : memref<3x8x128xf32, #tpu.memory_space<vmem>>, vector<1x8x128xf32>
    %13 = vector.shape_cast %12 : vector<1x8x128xf32> to vector<8x128xf32>
    %14 = vector.broadcast %2 : f32 to vector<8x128xf32>
    %15 = arith.subf %13, %14 : vector<8x128xf32>
    %16 = arith.mulf %7, %7 : vector<8x128xf32>
    %17 = arith.mulf %11, %11 : vector<8x128xf32>
    %18 = arith.addf %16, %17 : vector<8x128xf32>
    %19 = arith.mulf %15, %15 : vector<8x128xf32>
    %20 = arith.addf %18, %19 : vector<8x128xf32>
    %21 = math.sqrt %20 : vector<8x128xf32>
    %22 = vector.broadcast %3 : f32 to vector<8x128xf32>
    %23 = arith.mulf %22, %21 : vector<8x128xf32>
    %cst = arith.constant 0.000000e+00 : f32
    %24 = vector.broadcast %cst : f32 to vector<8x128xf32>
    %25 = arith.minimumf %23, %24 : vector<8x128xf32>
    %26 = math.absf %23 : vector<8x128xf32>
    %cst_9 = arith.constant 0.000000e+00 : f32
    %27 = vector.broadcast %cst_9 : f32 to vector<8x128xf32>
    %28 = arith.subf %27, %26 : vector<8x128xf32>
    %29 = math.exp %28 : vector<8x128xf32>
    %30 = math.log1p %29 : vector<8x128xf32>
    %31 = arith.subf %25, %30 : vector<8x128xf32>
    %c0_10 = arith.constant 0 : index
    %c0_11 = arith.constant 0 : index
    %32 = vector.load %arg3[%c0_10, %c0_11] : memref<8x128xf32, #tpu.memory_space<vmem>>, vector<8x128xf32>
    tpu.vector_store %arg3[%c0_10, %c0_11], %31 {strides = array<i32>} : memref<8x128xf32, #tpu.memory_space<vmem>>, vector<8x128xf32>,
    return
  }
  func.func @transform_0(%arg0: i32) -> i32 {
    %c0_i32 = arith.constant 0 : i32
    %c0_i32_0 = arith.constant 0 : i32
    return %c0_i32 : i32
  }
  func.func @transform_1(%arg0: i32) -> (i32, i32, i32) {
    %c0_i32 = arith.constant 0 : i32
    %c0_i32_0 = arith.constant 0 : i32
    %c0_i32_1 = arith.constant 0 : i32
    return %c0_i32, %arg0, %c0_i32_0 : i32, i32, i32
  }
  func.func @transform_2(%arg0: i32) -> (i32, i32) {
    %c0_i32 = arith.constant 0 : i32
    %c0_i32_0 = arith.constant 0 : i32
    return %arg0, %c0_i32 : i32, i32
  }
}

</mosaic_0001>

<llo_original>
// kernel: tpu_custom_call.1
$region0: #{tpu_custom_call.1}
  #allocation0 [shape = 'u32[]', space=smem, size = 0x4, offset = 0x4, fixed_abs, tag = 'smem constant byte address 0x4 - core index']
  #allocation1 [shape = 'u32[144,128]{1,0:T(1,128)}', space=vmem, size = 0x12000, scoped, tag = 'internal scratch']
  %s0 = inlined_call_operand.hbm [shape: f32[4], index: 0, kind: input, shape index: {}]
  %s1 = inlined_call_operand.hbm [shape: f32[3,8,128], index: 1, kind: input, shape index: {}]
  %s2 = inlined_call_operand.hbm [shape: f32[8,128], index: 2, kind: output, shape index: {}]
  %s3 = sld [smem:[#allocation0]]
  $region26: #{tpu_custom_call.1} parent=0
    _
  %s5 = ssub.s32 1, %s3
  %s6 = scalar_select 0, %s5, %s3
  $region1: #{tpu_custom_call.1} parent=0
    #allocation2 [shape = 'u8[512]{0}', space=smem, size = 0x200, scoped, tag = 'input window, operand 0, single buffered']
    #allocation3 [shape = 's32[1]{0}', space=sflag, size = 0x4, scoped, tag = 'scoped memory for tpu_custom_call.1']
    #allocation4 [shape = 's32[1]{0}', space=sflag, size = 0x4, scoped, tag = 'scoped memory for tpu_custom_call.1']
    #allocation5 [shape = 's32[1]{0}', space=sflag, size = 0x4, scoped, tag = 'scoped memory for tpu_custom_call.1']
    #allocation6 [shape = 'u8[12288]{0}', space=vmem, size = 0x3000, scoped, tag = 'input window, operand 1, single buffered']
    #allocation7 [shape = 'u8[4096]{0}', space=vmem, size = 0x1000, scoped, tag = 'output window, operand 0, single buffered']
    %7 = vsyncpa [#allocation5], 0
    %8 = vsyncpa [#allocation3], 0
    %9 = vsyncpa [#allocation4], 0
    // Predicated region
    $region2: #{tpu_custom_call.1} parent=1 // pred_check
      _
    $region3: #{tpu_custom_call.1} parent=1 // pred_check_branch
      %11 = sbr.rel (0) target = $region5
    $region4: #{tpu_custom_call.1} parent=1 // pred_region
      %s13 = ssub.s32 16, 16
      %14 = vsyncadd [#allocation5], %s13
      %17 = dma.hbm_to_smem %s0, 16, [#allocation2], [#allocation5]
    $region5: #{tpu_custom_call.1} parent=1 // pred_fallthru
      _
    // Predicated region
    $region6: #{tpu_custom_call.1} parent=1 // pred_check
      _
    $region7: #{tpu_custom_call.1} parent=1 // pred_check_branch
      %19 = sbr.rel (0) target = $region9
    $region8: #{tpu_custom_call.1} parent=1 // pred_region
      %s21 = ssub.s32 384, 384
      %22 = vsyncadd [#allocation3], %s21
      %s23 = sshll.u32 [#allocation6], 4
      %s24 = int_to_ptr.vmem [resolvable:$true] %s23
      %29 = dma.hbm_to_vmem [thread:$0]  %s1, 384, %s24, [#allocation3], 128, 128, 8
    $region9: #{tpu_custom_call.1} parent=1 // pred_fallthru
      _
    // Predicated region
    $region10: #{tpu_custom_call.1} parent=1 // pred_check
      _
    $region11: #{tpu_custom_call.1} parent=1 // pred_check_branch
      %31 = sbr.rel (0) target = $region13
    $region12: #{tpu_custom_call.1} parent=1 // pred_region
      %32 = dma.done [#allocation5], 16
    $region13: #{tpu_custom_call.1} parent=1 // pred_fallthru
      _
    // Predicated region
    $region14: #{tpu_custom_call.1} parent=1 // pred_check
      _
    $region15: #{tpu_custom_call.1} parent=1 // pred_check_branch
      %34 = sbr.rel (0) target = $region17
    $region16: #{tpu_custom_call.1} parent=1 // pred_region
      %35 = dma.done [#allocation3], 384
    $region17: #{tpu_custom_call.1} parent=1 // pred_fallthru
      _
    %36 = sfence
    %s37 = sld [smem:[#allocation2]]
    %s38 = sld [smem:[#allocation2 + $0x1]]
    %s39 = sld [smem:[#allocation2 + $0x2]]
    %s40 = sld [smem:[#allocation2 + $0x3]]
    %v41 = vld [vmem:[#allocation6] sm:$0xff]
    %v42 = vstv %s37
    %v43 = vsub.f32 %v41, %v42
    %s44 = scalar_lea.vmem [#allocation6], 8
    %v45 = vld [vmem:[%s44] sm:$0xff]
    %v46 = vstv %s38
    %v47 = vsub.f32 %v45, %v46
    %s48 = scalar_lea.vmem [#allocation6], 16
    %v49 = vld [vmem:[%s48] sm:$0xff]
    %v50 = vstv %s39
    %v51 = vsub.f32 %v49, %v50
    %v52 = vmul.f32 %v43, %v43
    %v53 = vmul.f32 %v47, %v47
    %v54 = vadd.f32 %v52, %v53
    %v55 = vmul.f32 %v51, %v51
    %v56 = vadd.f32 %v54, %v55
    %v57 = vrsqrt.pop %v56
    %v58 = vmul.f32 %v56, %v57
    %vm59 = vcmp.eq.f32.partialorder %v56, inf
    %v60 = vsel %vm59, %v56, %v58
    %vm61 = vcmp.eq.f32.partialorder %v56, 0.0
    %v62 = vand.u32 %v56, 2147483648
    %v63 = vsel %vm61, %v62, %v60
    %v64 = vstv %s40
    %v65 = vmul.f32 %v64, %v63
    %v66 = vmin.f32 %v65, 0.0
    %v67 = vand.u32 2147483647, %v65
    %v68 = vsub.f32 0.0, %v67
    %v69 = vmul.f32 %v68, 1.442695
    %v70 = vpow.pop %v69
    %v71 = vadd.f32 %v70, 1.0
    %v72 = vlog2.pop %v71
    %v73 = vmul.f32 %v72, 0.6931472
    %v74 = vmul.f32 -0.5, %v70
    %v75 = vadd.f32 %v74, 1.0
    %v76 = vmul.f32 %v75, %v70
    %v77 = vand.u32 2147483647, %v70
    %vm78 = vcmp.lt.f32.partialorder %v77, 0.0004427343
    %v79 = vsel %vm78, %v76, %v73
    %v80 = vsub.f32 %v66, %v79
    %81 = vst [vmem:[#allocation7] sm:$0xff] %v80
    // Predicated region
    $region18: #{tpu_custom_call.1} parent=1 // pred_check
      _
    $region19: #{tpu_custom_call.1} parent=1 // pred_check_branch
      %83 = sbr.rel (0) target = $region21
    $region20: #{tpu_custom_call.1} parent=1 // pred_region
      %s85 = ssub.s32 128, 128
      %86 = vsyncadd [#allocation4], %s85
      %s88 = sshll.u32 [#allocation7], 4
      %s89 = int_to_ptr.vmem [resolvable:$true] %s88
      %91 = dma.vmem_to_hbm [thread:$0]  %s89, 128, %s2, [#allocation4]
    $region21: #{tpu_custom_call.1} parent=1 // pred_fallthru
      _
    // Predicated region
    $region22: #{tpu_custom_call.1} parent=1 // pred_check
      _
    $region23: #{tpu_custom_call.1} parent=1 // pred_check_branch
      %93 = sbr.rel (0) target = $region25
    $region24: #{tpu_custom_call.1} parent=1 // pred_region
      %94 = dma.done [#allocation4], 128
    $region25: #{tpu_custom_call.1} parent=1 // pred_fallthru
      _
    %95 = vsyncpa [#allocation3], 1
    %96 = vsyncpa [#allocation4], 1
    %97 = vsyncpa [#allocation5], 1

</llo_original>
